<compile_context>
chip_gen: v7x
topology: tpu7x:2x2x1
jax: 0.10.0
libtpu: 0.0.40
codegen_flags: <defaults>
</compile_context>

<pallas_src>
import functools

import jax
import jax.numpy as jnp
from jax.experimental import pallas as pl
from jax.experimental.pallas import tpu as pltpu

_GRP = 128        # lane group width: every HBM intermediate is 128-lane dense
_DST_ROWS = 8     # sublane pad for the transposed dst-logit slab (nheads <= 8)
_BIG = 1e30       # finite "-inf" stand-in for masked scores / running-max init


# ---------------------------------------------------------------------------
# Kernel 1: fused projection (row-tiled).
# One MXU pass yields, per head packed along lanes:
#   columns [0, _GRP)      : nhid features then a 1.0 column (via bias row)
#   columns [_GRP, 2_GRP)  : src logits  h.a1   (lane = head index)
#   columns [2_GRP, 3_GRP) : dst logits  h.a2   (emitted TRANSPOSED)
# ---------------------------------------------------------------------------
def _projection_kernel(x_ref, w_ref, b_ref, h_aug_ref, s_src_ref, s_dstT_ref):
    x = x_ref[...].astype(jnp.bfloat16)
    w = w_ref[...].astype(jnp.bfloat16)
    proj = jnp.dot(x, w, preferred_element_type=jnp.float32) + b_ref[...]
    h_aug_ref[...] = proj[:, 0:_GRP].astype(jnp.bfloat16)
    s_src_ref[...] = proj[:, _GRP:2 * _GRP]
    dst_t = jnp.transpose(proj[:, 2 * _GRP:3 * _GRP])   # one XLU transpose / tile
    s_dstT_ref[...] = dst_t[0:_DST_ROWS, :]


def _project(x, w_big, bias, *, block_rows):
    n, fin = x.shape
    return pl.pallas_call(
        _projection_kernel,
        out_shape=(jax.ShapeDtypeStruct((n, _GRP), jnp.bfloat16),
                   jax.ShapeDtypeStruct((n, _GRP), jnp.float32),
                   jax.ShapeDtypeStruct((_DST_ROWS, n), jnp.float32)),
        grid=(n // block_rows,),
        in_specs=[pl.BlockSpec((block_rows, fin), lambda i: (i, 0)),
                  pl.BlockSpec((fin, 3 * _GRP), lambda i: (0, 0)),
                  pl.BlockSpec((1, 3 * _GRP), lambda i: (0, 0))],
        out_specs=(pl.BlockSpec((block_rows, _GRP), lambda i: (i, 0)),
                   pl.BlockSpec((block_rows, _GRP), lambda i: (i, 0)),
                   pl.BlockSpec((_DST_ROWS, block_rows), lambda i: (0, i))),
        compiler_params=pltpu.CompilerParams(
            dimension_semantics=("parallel",)),
    )(x, w_big, bias)


# ---------------------------------------------------------------------------
# Kernel 2: flash-style masked-softmax-free aggregation.
#   grid = (q tiles [parallel], k tiles [arbitrary, last])
#   online running max + rowsum per head live in VMEM scratch across k tiles.
# ---------------------------------------------------------------------------
def _flash_agg_kernel(s_src_ref, s_dstT_ref, h_aug_ref, adj_ref, out_ref,
                      m_ref, acc_ref, *, nheads, nhid, alpha, mode):
    hstr = nhid + 1
    ki = pl.program_id(1)

    @pl.when(ki == 0)
    def _init():
        m_ref[...] = jnp.full(m_ref.shape, -_BIG, jnp.float32)
        acc_ref[...] = jnp.zeros(acc_ref.shape, jnp.float32)

    mask = adj_ref[...].astype(jnp.float32)            # 0/1, streamed as int8
    penalty = (1.0 - mask) * _BIG                      # 0 on edges, BIG off-edge
    h_aug = h_aug_ref[...]                             # (tk, 128) bf16

    for hd in range(nheads):                           # static, small
        src = s_src_ref[:, hd:hd + 1]                  # (tq, 1)
        dst = s_dstT_ref[hd:hd + 1, :]                 # (1, tk) pre-transposed
        sc = src + dst                                 # (tq, tk)
        # -LeakyReLU via max (no compare/select); mask folded in arithmetically.
        neg = -jnp.maximum(sc, alpha * sc) - penalty
        m_prev = m_ref[:, hd:hd + 1]
        m_new = jnp.maximum(m_prev, jnp.max(neg, axis=-1, keepdims=True))
        rescale = jnp.exp(m_prev - m_new)              # online-max correction
        p = mask * jnp.exp(neg - m_new)                # <= 1, overflow-free
        # Full-width bf16 MXU pass; the per-head ones column in h_aug makes the
        # rowsum fall out of the same matmul (no separate XLU row reduction).
        prod = jnp.dot(p.astype(jnp.bfloat16), h_aug,
                       preferred_element_type=jnp.float32)        # (tq, 128)
        acc_ref[hd] = rescale * acc_ref[hd] + prod[:, hd * hstr:(hd + 1) * hstr]
        m_ref[:, hd:hd + 1] = m_new

    @pl.when(ki == pl.num_programs(1) - 1)
    def _finalize():
        pieces = []
        for hd in range(nheads):
            acc = acc_ref[hd]                          # (tq, nhid+1)
            hp = acc[:, :nhid] / acc[:, nhid:nhid + 1]  # exact divide (once/tile)
            if mode == "elu":                          # concat=True heads
                hp = jnp.where(hp > 0, hp, jnp.expm1(hp))
            pieces.append(hp)
        y = pieces[0] if nheads == 1 else jnp.concatenate(pieces, axis=1)
        if mode == "elu_log_softmax":                  # SpGAT-level elu+log_softmax
            y = jnp.where(y > 0, y, jnp.expm1(y))
            z = y - jnp.max(y, axis=-1, keepdims=True)
            y = z - jnp.log(jnp.sum(jnp.exp(z), axis=-1, keepdims=True))
        pad = out_ref.shape[1] - y.shape[1]
        if pad:
            y = jnp.concatenate(
                [y, jnp.zeros((y.shape[0], pad), jnp.float32)], axis=1)
        out_ref[...] = y.astype(out_ref.dtype)         # 128-lane-dense store


def _flash_aggregate(s_src, s_dstT, h_aug, adj_mask, *, nheads, nhid, alpha,
                     mode, block_q, block_k):
    n = adj_mask.shape[0]
    hstr = nhid + 1
    kernel = functools.partial(_flash_agg_kernel, nheads=nheads, nhid=nhid,
                               alpha=alpha, mode=mode)
    # NOTE: on v5e, sweeping pipeline depth on the adj stream (pl.Buffered(3))
    # and larger column tiles can recover exposed DMA; defaults kept here.
    return pl.pallas_call(
        kernel,
        out_shape=jax.ShapeDtypeStruct((n, _GRP), jnp.float32),
        grid=(n // block_q, n // block_k),
        in_specs=[
            pl.BlockSpec((block_q, _GRP), lambda qi, ki: (qi, 0)),
            pl.BlockSpec((_DST_ROWS, block_k), lambda qi, ki: (0, ki)),
            pl.BlockSpec((block_k, _GRP), lambda qi, ki: (ki, 0)),
            pl.BlockSpec((block_q, block_k), lambda qi, ki: (qi, ki)),
        ],
        out_specs=pl.BlockSpec((block_q, _GRP), lambda qi, ki: (qi, 0)),
        scratch_shapes=[pltpu.VMEM((block_q, nheads), jnp.float32),
                        pltpu.VMEM((nheads, block_q, hstr), jnp.float32)],
        compiler_params=pltpu.CompilerParams(
            dimension_semantics=("parallel", "arbitrary")),
    )(s_src, s_dstT, h_aug, adj_mask)


# ---------------------------------------------------------------------------
# Weight packing for the projection kernel.
# ---------------------------------------------------------------------------
def _pack_proj_weights(ws, avs, out_per_head, in_dim):
    nheads = len(ws)
    hstr = out_per_head + 1
    assert nheads * hstr <= _GRP and nheads <= _DST_ROWS
    w_big = jnp.zeros((in_dim, 3 * _GRP), jnp.float32)
    bias = jnp.zeros((1, 3 * _GRP), jnp.float32)
    for hd, (w, a) in enumerate(zip(ws, avs)):
        rows = w.shape[0]
        a1 = a[0, :out_per_head]
        a2 = a[0, out_per_head:]
        w_big = w_big.at[:rows, hd * hstr:hd * hstr + out_per_head].set(w)
        bias = bias.at[0, hd * hstr + out_per_head].set(1.0)    # ones column
        w_big = w_big.at[:rows, _GRP + hd].set(w @ a1)          # src logits
        w_big = w_big.at[:rows, 2 * _GRP + hd].set(w @ a2)      # dst logits
    return w_big, bias


# ---------------------------------------------------------------------------
# Full SpGAT forward (eval mode).
# ---------------------------------------------------------------------------
def spgat_forward(x, adj, params, *, alpha, block_q=128, block_k=128):
    # F.dropout(x, p, training=False) == identity in eval mode.
    # TODO(synk): training-mode dropout (in-kernel PRNG on edge weights) omitted.
    n, nfeat = x.shape
    ws = [w for (w, _) in params["attentions"]]
    avs = [a for (_, a) in params["attentions"]]
    nheads, nhid = len(ws), ws[0].shape[1]
    w_out, a_out = params["out_att"]
    nclass = w_out.shape[1]

    block_q = min(block_q, n)
    block_k = min(block_k, n)
    assert n % block_q == 0 and n % block_k == 0

    # adj is only used as a mask (adj.nonzero()); stream it as int8.
    adj_mask = (adj != 0).astype(jnp.int8)

    # ---- layer 1: nheads attention heads, concat + per-head ELU ------------
    w1, b1 = _pack_proj_weights(ws, avs, nhid, nfeat)
    h_aug1, s_src1, s_dst1 = _project(x.astype(jnp.float32), w1, b1,
                                      block_rows=block_q)
    h_cat = _flash_aggregate(s_src1, s_dst1, h_aug1, adj_mask,
                             nheads=nheads, nhid=nhid, alpha=alpha, mode="elu",
                             block_q=block_q, block_k=block_k)   # (N, 128) f32

    # ---- out_att layer (concat=False) + F.elu + log_softmax ----------------
    w2, b2 = _pack_proj_weights([w_out], [a_out], nclass, _GRP)
    h_aug2, s_src2, s_dst2 = _project(h_cat, w2, b2, block_rows=block_q)
    out_pad = _flash_aggregate(s_src2, s_dst2, h_aug2, adj_mask,
                               nheads=1, nhid=nclass, alpha=alpha,
                               mode="elu_log_softmax",
                               block_q=block_q, block_k=block_k)
    return out_pad[:, :nclass]


# ---------------------------------------------------------------------------
# Deterministic parameter init (xavier-uniform-ish, mirrors pyGAT shapes)
# ---------------------------------------------------------------------------
def init_params(key, nfeat, nhid, nclass, nheads):
    def xavier(key, shape):
        fan_in, fan_out = shape[-2], shape[-1]
        bound = (6.0 / (fan_in + fan_out)) ** 0.5
        return jax.random.uniform(key, shape, jnp.float32, -bound, bound)

    keys = jax.random.split(key, 2 * nheads + 2)
    attentions = []
    for i in range(nheads):
        w = xavier(keys[2 * i], (nfeat, nhid))
        a = xavier(keys[2 * i + 1], (1, 2 * nhid))
        attentions.append((w, a))
    w_out = xavier(keys[-2], (nhid * nheads, nclass))
    a_out = xavier(keys[-1], (1, 2 * nclass))
    return {"attentions": attentions, "out_att": (w_out, a_out)}


# ---------------------------------------------------------------------------
# Main
# ---------------------------------------------------------------------------
if __name__ == "__main__":
    N, nfeat, nhid, nclass, nheads = 256, 32, 8, 4, 2   # grid (2,2): tiled path
    alpha, dropout = 0.2, 0.6                           # dropout unused (eval)

    key = jax.random.PRNGKey(0)
    kx, kadj, kparam = jax.random.split(key, 3)

    x = jax.random.normal(kx, (N, nfeat), jnp.float32)
    # random sparse adjacency with self-loops (so rowsum > 0 for every node)
    adj = (jax.random.uniform(kadj, (N, N)) < 0.05).astype(jnp.float32)
    adj = jnp.maximum(adj, jnp.eye(N, dtype=jnp.float32))

    params = init_params(kparam, nfeat, nhid, nclass, nheads)

    out = spgat_forward(x, adj, params, alpha=alpha)
    out = jax.block_until_ready(out)

    assert out.shape == (N, nclass)
    assert bool(jnp.all(jnp.isfinite(out)))
    print("KERNEL_OK")
</pallas_src>

<mosaic_0001>
module attributes {stable_mosaic.version = 11 : i64} {
  func.func @_projection_kernel(%arg0: i32, %arg1: memref<128x32xf32, #tpu.memory_space<vmem>>, %arg2: memref<32x384xf32, #tpu.memory_space<vmem>>, %arg3: memref<1x384xf32, #tpu.memory_space<vmem>>, %arg4: memref<128x128xbf16, #tpu.memory_space<vmem>>, %arg5: memref<128x128xf32, #tpu.memory_space<vmem>>, %arg6: memref<8x128xf32, #tpu.memory_space<vmem>>) attributes {dimension_semantics = [#tpu.dimension_semantics<parallel>], iteration_bounds = array<i64: 2>, scalar_prefetch = 0 : i64, scratch_operands = 0 : i64, tpu.core_type = #tpu.core_type<tc>, window_params = [{transform_indices = @transform_0, window_bounds = array<i64: 128, 32>}, {pipeline_mode = #tpu.pipeline_mode<synchronous>, transform_indices = @transform_1, window_bounds = array<i64: 32, 384>}, {pipeline_mode = #tpu.pipeline_mode<synchronous>, transform_indices = @transform_2, window_bounds = array<i64: 1, 384>}, {transform_indices = @transform_3, window_bounds = array<i64: 128, 128>}, {transform_indices = @transform_4, window_bounds = array<i64: 128, 128>}, {transform_indices = @transform_5, window_bounds = array<i64: 8, 128>}]} {
    %c0 = arith.constant 0 : index
    %c0_0 = arith.constant 0 : index
    %0 = vector.load %arg1[%c0, %c0_0] : memref<128x32xf32, #tpu.memory_space<vmem>>, vector<128x32xf32>
    %1 = arith.truncf %0 : vector<128x32xf32> to vector<128x32xbf16>
    %c0_1 = arith.constant 0 : index
    %c0_2 = arith.constant 0 : index
    %2 = vector.load %arg2[%c0_1, %c0_2] : memref<32x384xf32, #tpu.memory_space<vmem>>, vector<32x384xf32>
    %3 = arith.truncf %2 : vector<32x384xf32> to vector<32x384xbf16>
    %cst = arith.constant dense<0.000000e+00> : vector<128x384xf32>
    %4 = tpu.matmul %1, %3, %cst {dimension_numbers = #tpu.dot_dimension_numbers<[1], [0], [0], [1], [0, 0, 1, 1], [], []>} : vector<128x32xbf16>, vector<32x384xbf16>, vector<128x384xf32> -> vector<128x384xf32>
    %c0_3 = arith.constant 0 : index
    %c0_4 = arith.constant 0 : index
    %5 = vector.load %arg3[%c0_3, %c0_4] : memref<1x384xf32, #tpu.memory_space<vmem>>, vector<1x384xf32>
    %6 = vector.broadcast %5 : vector<1x384xf32> to vector<128x384xf32>
    %7 = arith.addf %4, %6 : vector<128x384xf32>
    %8 = vector.extract_strided_slice %7 {offsets = [0, 0], sizes = [128, 128], strides = [1, 1]} : vector<128x384xf32> to vector<128x128xf32>
    %9 = arith.truncf %8 : vector<128x128xf32> to vector<128x128xbf16>
    %c0_5 = arith.constant 0 : index
    %c0_6 = arith.constant 0 : index
    %10 = vector.load %arg4[%c0_5, %c0_6] : memref<128x128xbf16, #tpu.memory_space<vmem>>, vector<128x128xbf16>
    tpu.vector_store %arg4[%c0_5, %c0_6], %9 {strides = array<i32>} : memref<128x128xbf16, #tpu.memory_space<vmem>>, vector<128x128xbf16>,
    %11 = vector.extract_strided_slice %7 {offsets = [0, 128], sizes = [128, 128], strides = [1, 1]} : vector<128x384xf32> to vector<128x128xf32>
    %c0_7 = arith.constant 0 : index
    %c0_8 = arith.constant 0 : index
    %12 = vector.load %arg5[%c0_7, %c0_8] : memref<128x128xf32, #tpu.memory_space<vmem>>, vector<128x128xf32>
    tpu.vector_store %arg5[%c0_7, %c0_8], %11 {strides = array<i32>} : memref<128x128xf32, #tpu.memory_space<vmem>>, vector<128x128xf32>,
    %13 = vector.extract_strided_slice %7 {offsets = [0, 256], sizes = [128, 128], strides = [1, 1]} : vector<128x384xf32> to vector<128x128xf32>
    %14 = tpu.transpose %13, [1, 0] : vector<128x128xf32> -> vector<128x128xf32>
    %15 = vector.extract_strided_slice %14 {offsets = [0, 0], sizes = [8, 128], strides = [1, 1]} : vector<128x128xf32> to vector<8x128xf32>
    %c0_9 = arith.constant 0 : index
    %c0_10 = arith.constant 0 : index
    %16 = vector.load %arg6[%c0_9, %c0_10] : memref<8x128xf32, #tpu.memory_space<vmem>>, vector<8x128xf32>
    tpu.vector_store %arg6[%c0_9, %c0_10], %15 {strides = array<i32>} : memref<8x128xf32, #tpu.memory_space<vmem>>, vector<8x128xf32>,
    return
  }
  func.func @transform_0(%arg0: i32) -> (i32, i32) {
    %c0_i32 = arith.constant 0 : i32
    %c0_i32_0 = arith.constant 0 : i32
    return %arg0, %c0_i32 : i32, i32
  }
  func.func @transform_1(%arg0: i32) -> (i32, i32) {
    %c0_i32 = arith.constant 0 : i32
    %c0_i32_0 = arith.constant 0 : i32
    %c0_i32_1 = arith.constant 0 : i32
    return %c0_i32, %c0_i32_0 : i32, i32
  }
  func.func @transform_2(%arg0: i32) -> (i32, i32) {
    %c0_i32 = arith.constant 0 : i32
    %c0_i32_0 = arith.constant 0 : i32
    %c0_i32_1 = arith.constant 0 : i32
    return %c0_i32, %c0_i32_0 : i32, i32
  }
  func.func @transform_3(%arg0: i32) -> (i32, i32) {
    %c0_i32 = arith.constant 0 : i32
    %c0_i32_0 = arith.constant 0 : i32
    return %arg0, %c0_i32 : i32, i32
  }
  func.func @transform_4(%arg0: i32) -> (i32, i32) {
    %c0_i32 = arith.constant 0 : i32
    %c0_i32_0 = arith.constant 0 : i32
    return %arg0, %c0_i32 : i32, i32
  }
  func.func @transform_5(%arg0: i32) -> (i32, i32) {
    %c0_i32 = arith.constant 0 : i32
    %c0_i32_0 = arith.constant 0 : i32
    return %c0_i32, %arg0 : i32, i32
  }
}

</mosaic_0001>

<llo_original>
// kernel: tpu_custom_call.1
$region0: #{tpu_custom_call.1}
  #allocation0 [shape = 'u32[]', space=smem, size = 0x4, offset = 0x4, fixed_abs, tag = 'smem constant byte address 0x4 - core index']
  #allocation1 [shape = 'u32[144,128]{1,0:T(1,128)}', space=vmem, size = 0x12000, scoped, tag = 'internal scratch']
  %s0 = inlined_call_operand.vmem [shape: f32[256,32], index: 0, kind: input, shape index: {}]
  %s1 = inlined_call_operand.vmem [shape: f32[32,384], index: 1, kind: input, shape index: {}]
  %s2 = inlined_call_operand.vmem [shape: f32[1,384], index: 2, kind: input, shape index: {}]
  %s3 = inlined_call_operand.hbm [shape: bf16[256,128], index: 3, kind: output, shape index: {0}]
  %s4 = inlined_call_operand.hbm [shape: f32[256,128], index: 4, kind: output, shape index: {1}]
  %s5 = inlined_call_operand.hbm [shape: f32[8,256], index: 5, kind: output, shape index: {2}]
  %6 = xla_tuple %s3, %s4, %s5
  %s7 = sld [smem:[#allocation0]]
  $region61: #{tpu_custom_call.1} parent=0
    _
  %s9 = ssub.s32 1, %s7
  %s10 = scalar_select 0, %s9, %s7
  $region1: #{tpu_custom_call.1} parent=0
    #allocation2 [shape = 'u8[65536]{0}', space=vmem, size = 0x10000, scoped, tag = 'output window, operand 0']
    #allocation3 [shape = 's32[2]{0}', space=sflag, size = 0x8, scoped, tag = 'scoped memory for tpu_custom_call.1']
    #allocation4 [shape = 'u8[131072]{0}', space=vmem, size = 0x20000, scoped, tag = 'output window, operand 1']
    #allocation5 [shape = 's32[2]{0}', space=sflag, size = 0x8, scoped, tag = 'scoped memory for tpu_custom_call.1']
    #allocation6 [shape = 'u8[8192]{0}', space=vmem, size = 0x2000, scoped, tag = 'output window, operand 2']
    %11 = vsyncpa [#allocation3], 0
    %s12 = scalar_lea.sflag [#allocation3], 1
    %13 = vsyncpa %s12, 0
    %14 = vsyncpa [#allocation5], 0
    %s15 = scalar_lea.sflag [#allocation5], 1
    %16 = vsyncpa %s15, 0
    loop: start=0, step=1, limit=4
    $region2: #{tpu_custom_call.1} parent=1 // loop_pre_header
      _
    $region3: #{tpu_custom_call.1} parent=1 // loop_header
      %s18 = sphi 0, %s22
      %p19 = scmp.ge.s32.totalorder %s18, 4
      %s28 = sphi 0, %s30
      %s31 = sphi 0, %s28
      %s32 = sphi 0, %s31
      %s48 = sphi 0, %s32
      %s52 = sphi 0, %s52
      %s54 = sphi 0, %s52
      %s55 = sphi 0, %s54
      %s69 = sphi 0, %s55
      %s73 = sphi 0, %s73
      %s75 = sphi 0, %s73
      %s76 = sphi 0, %s75
      %s90 = sphi 0, %s76
      %s96 = sphi 0, %s98
      %s99 = sphi 0, %s96
      %s100 = sphi 0, %s99
      %s116 = sphi 0, %s100
      %s122 = sphi 0, %s124
      %s125 = sphi 0, %s122
      %s126 = sphi 0, %s125
      %s142 = sphi 0, %s126
      %s148 = sphi 0, %s150
      %s151 = sphi 0, %s148
      %s152 = sphi 0, %s151
      %s168 = sphi 0, %s152
    $region4: #{tpu_custom_call.1} parent=1 // loop_header_branch
      %21 = sbr.rel (%p19) target = $region8
    $region5: #{tpu_custom_call.1} parent=1 // loop_body
      %s23 = ssub.s32 %s18, 1
      %s24 = ssub.s32 %s18, 2
      %s25 = sadd.s32 %s18, 1
      %s26 = ssub.s32 %s18, %s25
      %p27 = scmp.eq.s32.totalorder %s26, 0
      %s29 = sadd.s32 %s28, 1
      %s30 = scalar_select %p27, %s28, %s29
      %p33 = pneg %p27
      %p34 = scmp.eq.s32.totalorder %s18, 1
      %p35 = por %p33, %p34
      %p36 = scmp.ne.s32.totalorder %s28, %s31
      %p37 = scmp.eq.s32.totalorder %s18, 0
      %p38 = por %p36, %p37
      %p39 = scmp.ne.s32.totalorder %s28, %s31
      %p40 = scmp.eq.s32.totalorder %s23, 1
      %p41 = por %p39, %p40
      %p42 = scmp.ne.s32.totalorder %s31, %s32
      %p43 = scmp.eq.s32.totalorder %s23, 0
      %p44 = por %p42, %p43
      %p45 = scmp.ne.s32.totalorder %s31, %s32
      %p46 = scmp.eq.s32.totalorder %s24, 1
      %p47 = por %p45, %p46
      %p49 = scmp.ne.s32.totalorder %s32, %s48
      %p50 = scmp.eq.s32.totalorder %s24, 0
      %p51 = por %p49, %p50
      %s53 = sadd.s32 %s52, 1
      %p56 = scmp.eq.s32.totalorder %s18, 1
      %p57 = scmp.ne.s32.totalorder %s52, %s54
      %p58 = scmp.eq.s32.totalorder %s18, 0
      %p59 = por %p57, %p58
      %p60 = scmp.ne.s32.totalorder %s52, %s54
      %p61 = scmp.eq.s32.totalorder %s23, 1
      %p62 = por %p60, %p61
      %p63 = scmp.ne.s32.totalorder %s54, %s55
      %p64 = scmp.eq.s32.totalorder %s23, 0
      %p65 = por %p63, %p64
      %p66 = scmp.ne.s32.totalorder %s54, %s55
      %p67 = scmp.eq.s32.totalorder %s24, 1
      %p68 = por %p66, %p67
      %p70 = scmp.ne.s32.totalorder %s55, %s69
      %p71 = scmp.eq.s32.totalorder %s24, 0
      %p72 = por %p70, %p71
      %s74 = sadd.s32 %s73, 1
      %p77 = scmp.eq.s32.totalorder %s18, 1
      %p78 = scmp.ne.s32.totalorder %s73, %s75
      %p79 = scmp.eq.s32.totalorder %s18, 0
      %p80 = por %p78, %p79
      %p81 = scmp.ne.s32.totalorder %s73, %s75
      %p82 = scmp.eq.s32.totalorder %s23, 1
      %p83 = por %p81, %p82
      %p84 = scmp.ne.s32.totalorder %s75, %s76
      %p85 = scmp.eq.s32.totalorder %s23, 0
      %p86 = por %p84, %p85
      %p87 = scmp.ne.s32.totalorder %s75, %s76
      %p88 = scmp.eq.s32.totalorder %s24, 1
      %p89 = por %p87, %p88
      %p91 = scmp.ne.s32.totalorder %s76, %s90
      %p92 = scmp.eq.s32.totalorder %s24, 0
      %p93 = por %p91, %p92
      %s94 = ssub.s32 %s18, %s25
      %p95 = scmp.eq.s32.totalorder %s94, 0
      %s97 = sadd.s32 %s96, 1
      %s98 = scalar_select %p95, %s96, %s97
      %p101 = pneg %p95
      %p102 = scmp.eq.s32.totalorder %s18, 1
      %p103 = por %p101, %p102
      %p104 = scmp.ne.s32.totalorder %s96, %s99
      %p105 = scmp.eq.s32.totalorder %s18, 0
      %p106 = por %p104, %p105
      %p107 = scmp.ne.s32.totalorder %s96, %s99
      %p108 = scmp.eq.s32.totalorder %s23, 1
      %p109 = por %p107, %p108
      %p110 = scmp.ne.s32.totalorder %s99, %s100
      %p111 = scmp.eq.s32.totalorder %s23, 0
      %p112 = por %p110, %p111
      %p113 = scmp.ne.s32.totalorder %s99, %s100
      %p114 = scmp.eq.s32.totalorder %s24, 1
      %p115 = por %p113, %p114
      %p117 = scmp.ne.s32.totalorder %s100, %s116
      %p118 = scmp.eq.s32.totalorder %s24, 0
      %p119 = por %p117, %p118
      %s120 = ssub.s32 %s18, %s25
      %p121 = scmp.eq.s32.totalorder %s120, 0
      %s123 = sadd.s32 %s122, 1
      %s124 = scalar_select %p121, %s122, %s123
      %p127 = pneg %p121
      %p128 = scmp.eq.s32.totalorder %s18, 1
      %p129 = por %p127, %p128
      %p130 = scmp.ne.s32.totalorder %s122, %s125
      %p131 = scmp.eq.s32.totalorder %s18, 0
      %p132 = por %p130, %p131
      %p133 = scmp.ne.s32.totalorder %s122, %s125
      %p134 = scmp.eq.s32.totalorder %s23, 1
      %p135 = por %p133, %p134
      %p136 = scmp.ne.s32.totalorder %s125, %s126
      %p137 = scmp.eq.s32.totalorder %s23, 0
      %p138 = por %p136, %p137
      %p139 = scmp.ne.s32.totalorder %s125, %s126
      %p140 = scmp.eq.s32.totalorder %s24, 1
      %p141 = por %p139, %p140
      %p143 = scmp.ne.s32.totalorder %s126, %s142
      %p144 = scmp.eq.s32.totalorder %s24, 0
      %p145 = por %p143, %p144
      %s146 = ssub.s32 %s18, %s25
      %p147 = scmp.eq.s32.totalorder %s146, 0
      %s149 = sadd.s32 %s148, 1
      %s150 = scalar_select %p147, %s148, %s149
      %p153 = pneg %p147
      %p154 = scmp.eq.s32.totalorder %s18, 1
      %p155 = por %p153, %p154
      %p156 = scmp.ne.s32.totalorder %s148, %s151
      %p157 = scmp.eq.s32.totalorder %s18, 0
      %p158 = por %p156, %p157
      %p159 = scmp.ne.s32.totalorder %s148, %s151
      %p160 = scmp.eq.s32.totalorder %s23, 1
      %p161 = por %p159, %p160
      %p162 = scmp.ne.s32.totalorder %s151, %s152
      %p163 = scmp.eq.s32.totalorder %s23, 0
      %p164 = por %p162, %p163
      %p165 = scmp.ne.s32.totalorder %s151, %s152
      %p166 = scmp.eq.s32.totalorder %s24, 1
      %p167 = por %p165, %p166
      %p169 = scmp.ne.s32.totalorder %s152, %s168
      %p170 = scmp.eq.s32.totalorder %s24, 0
      %p171 = por %p169, %p170
      %p172 = scmp.le.s32.totalorder 1, %s18
      %p173 = scmp.lt.s32.totalorder %s18, 3
      %p174 = pnand %p172, %p173
      %p175 = pneg %p174
      // Predicated region
      $region9: #{tpu_custom_call.1} parent=5 // pred_check
        _
      $region10: #{tpu_custom_call.1} parent=5 // pred_check_branch
        %177 = sbr.rel (%p174) target = $region12
      $region11: #{tpu_custom_call.1} parent=5 // pred_region
        %s178 = ssub.s32 %s18, 1
        // Predicated region
        $region13: #{tpu_custom_call.1} parent=11 // pred_check
          %p179 = pneg %p65
        $region14: #{tpu_custom_call.1} parent=11 // pred_check_branch
          %181 = sbr.rel (%p179) target = $region16
        $region15: #{tpu_custom_call.1} parent=11 // pred_region
          _
        $region16: #{tpu_custom_call.1} parent=11 // pred_fallthru
          _
        // Predicated region
        $region17: #{tpu_custom_call.1} parent=11 // pred_check
          %p182 = pneg %p86
        $region18: #{tpu_custom_call.1} parent=11 // pred_check_branch
          %184 = sbr.rel (%p182) target = $region20
        $region19: #{tpu_custom_call.1} parent=11 // pred_region
          _
        $region20: #{tpu_custom_call.1} parent=11 // pred_fallthru
          _
      $region12: #{tpu_custom_call.1} parent=5 // pred_fallthru
        _
      %p185 = scmp.lt.s32.totalorder %s18, 2
      // Predicated region
      $region21: #{tpu_custom_call.1} parent=5 // pred_check
        %p186 = pneg %p185
      $region22: #{tpu_custom_call.1} parent=5 // pred_check_branch
        %188 = sbr.rel (%p186) target = $region24
      $region23: #{tpu_custom_call.1} parent=5 // pred_region
        // Predicated region
        $region25: #{tpu_custom_call.1} parent=23 // pred_check
          %p189 = pneg %p38
        $region26: #{tpu_custom_call.1} parent=23 // pred_check_branch
          %191 = sbr.rel (%p189) target = $region28
        $region27: #{tpu_custom_call.1} parent=23 // pred_region
          %s192 = smul.u32 16, %s18
          %p193 = scmp.lt.s32.totalorder %s192, 31
          %s194 = scalar_select %p193, %s192, 31
          %s195 = smul.addr %s194, 8
          %s196 = scalar_lea.vmem %s0, %s195
          %s197 = smul.u32 16, %s18
        $region28: #{tpu_custom_call.1} parent=23 // pred_fallthru
          _
      $region24: #{tpu_custom_call.1} parent=5 // pred_fallthru
        _
      %p198 = scmp.le.s32.totalorder 1, %s18
      %p199 = scmp.lt.s32.totalorder %s18, 3
      %p200 = pnand %p198, %p199
      %p201 = pneg %p200
      // Predicated region
      $region29: #{tpu_custom_call.1} parent=5 // pred_check
        _
      $region30: #{tpu_custom_call.1} parent=5 // pred_check_branch
        %203 = sbr.rel (%p200) target = $region32
      $region31: #{tpu_custom_call.1} parent=5 // pred_region
        %s204 = ssub.s32 %s18, 1
        %s205 = smul.u32 16, %s23
        %p206 = scmp.lt.s32.totalorder %s205, 31
        %s207 = scalar_select %p206, %s205, 31
        %s208 = smul.addr %s207, 8
        %s209 = scalar_lea.vmem %s0, %s208
        %p210 = pneg %p44
        %p211 = pneg %p41
        %p212 = pneg %p65
        %p213 = pneg %p62
        %p214 = pneg %p86
        %p215 = pneg %p83
        %p216 = pneg %p112
        %p217 = pneg %p109
        %s218 = sand.u32 %s99, 1
        %s219 = scalar_lea.sflag [#allocation3], %s218
        %s220 = sand.u32 %s99, 1
        %s221 = smul.addr %s220, 64
        %s222 = scalar_lea.vmem [#allocation2], %s221
        %p223 = pneg %p138
        %p224 = pneg %p135
        %s225 = sand.u32 %s23, 1
        %s226 = scalar_lea.sflag [#allocation5], %s225
        %s227 = sand.u32 %s125, 1
        %s228 = smul.addr %s227, 128
        %s229 = scalar_lea.vmem [#allocation4], %s228
        %p230 = pneg %p164
        %p231 = pneg %p161
        %s232 = sand.u32 %s23, 1
        %s233 = scalar_lea.sflag [#allocation5], %s232
        %s234 = sand.u32 %s151, 1
        %s235 = smul.addr %s234, 8
        %s236 = scalar_lea.vmem [#allocation6], %s235
        %s237 = smul.u32 16, %s23
        %p238 = scmp.lt.s32.totalorder %s237, 31
        %s239 = scalar_select %p238, %s237, 31
        %s240 = smul.addr %s239, 8
        %s241 = scalar_lea.vmem %s0, %s240
        %s242 = smul.u32 16, %s23
        %s243 = smul.u32 16, %s23
        %s244 = smul.u32 16, %s23
        %v246 = vld [vmem:[%s241] sm:$0xff]
        %v247 = vld [vmem:[%s241 + $0x8] sm:$0xff]
        %v248 = vld [vmem:[%s241 + $0x10] sm:$0xff]
        %v249 = vld [vmem:[%s241 + $0x18] sm:$0xff]
        %v250 = vld [vmem:[%s241 + $0x20] sm:$0xff]
        %v251 = vld [vmem:[%s241 + $0x28] sm:$0xff]
        %v252 = vld [vmem:[%s241 + $0x30] sm:$0xff]
        %v253 = vld [vmem:[%s241 + $0x38] sm:$0xff]
        %v254 = vld [vmem:[%s241 + $0x40] sm:$0xff]
        %v255 = vld [vmem:[%s241 + $0x48] sm:$0xff]
        %v256 = vld [vmem:[%s241 + $0x50] sm:$0xff]
        %v257 = vld [vmem:[%s241 + $0x58] sm:$0xff]
        %v258 = vld [vmem:[%s241 + $0x60] sm:$0xff]
        %v259 = vld [vmem:[%s241 + $0x68] sm:$0xff]
        %v260 = vld [vmem:[%s241 + $0x70] sm:$0xff]
        %v261 = vld [vmem:[%s241 + $0x78] sm:$0xff]
        %v262 = vpack.c.bf16 %v247, %v246
        %v263 = vpack.c.bf16 %v249, %v248
        %v264 = vpack.c.bf16 %v251, %v250
        %v265 = vpack.c.bf16 %v253, %v252
        %v266 = vpack.c.bf16 %v255, %v254
        %v267 = vpack.c.bf16 %v257, %v256
        %v268 = vpack.c.bf16 %v259, %v258
        %v269 = vpack.c.bf16 %v261, %v260
        %v270 = vld [vmem:[%s1] sm:$0xff]
        %v271 = vld [vmem:[%s1 + $0x8] sm:$0xff]
        %v272 = vld [vmem:[%s1 + $0x10] sm:$0xff]
        %v273 = vld [vmem:[%s1 + $0x18] sm:$0xff]
        %v274 = vld [vmem:[%s1 + $0x20] sm:$0xff]
        %v275 = vld [vmem:[%s1 + $0x28] sm:$0xff]
        %v276 = vld [vmem:[%s1 + $0x30] sm:$0xff]
        %v277 = vld [vmem:[%s1 + $0x38] sm:$0xff]
        %v278 = vld [vmem:[%s1 + $0x40] sm:$0xff]
        %v279 = vld [vmem:[%s1 + $0x48] sm:$0xff]
        %v280 = vld [vmem:[%s1 + $0x50] sm:$0xff]
        %v281 = vld [vmem:[%s1 + $0x58] sm:$0xff]
        %v282 = vpack.c.bf16 %v273, %v270
        %v283 = vpack.c.bf16 %v274, %v271
        %v284 = vpack.c.bf16 %v275, %v272
        %v285 = vpack.c.bf16 %v279, %v276
        %v286 = vpack.c.bf16 %v280, %v277
        %v287 = vpack.c.bf16 %v281, %v278
        %v288 = vld [vmem:[%s2] sm:$0x7]
        %v290 = vlaneseq
        %v291 = vshrl.u32 %v290, 7
        %v292 = vsub.s32 0, %v291
        %v293 = vrot.slane %v288, %v292
        %v294 = vlaneseq
        %v295 = vshrl.u32 %v294, 7
        %v296 = vsub.s32 1, %v295
        %v297 = vrot.slane %v288, %v296
        %v298 = vlaneseq
        %v299 = vshrl.u32 %v298, 7
        %v300 = vsub.s32 2, %v299
        %v301 = vrot.slane %v288, %v300
        %vm305 = vcmask 261120
        %v307 = vsel %vm305, %v262, 0
        %v310 = vsel %vm305, %v263, 0
        %v313 = vsel %vm305, %v264, 0
        %v316 = vsel %vm305, %v265, 0
        %v319 = vsel %vm305, %v266, 0
        %v322 = vsel %vm305, %v267, 0
        %v325 = vsel %vm305, %v268, 0
        %v328 = vsel %vm305, %v269, 0
        %330 = vmatprep.subr.bf16.mxu0 %v283
        %331 = vmatpush1.bf16.msra.mxu0 %v282
        %332 = vmatprep.subr.bf16.mxu0 %v286
        %333 = vmatpush1.bf16.msra.mxu0 %v285
        %334 = vmatprep.subr.bf16.mxu0 0
        %335 = vmatpush1.bf16.msra.mxu0 0
        %336 = vmatprep.subr.bf16.mxu0 0
        %337 = vmatpush1.bf16.msra.mxu0 0
        %338 = vmatprep.subr.bf16.mxu0 0
        %339 = vmatpush1.bf16.msra.mxu0 0
        %340 = vmatprep.subr.bf16.mxu0 0
        %341 = vmatpush1.bf16.msra.mxu0 0
        %342 = vmatprep.subr.bf16.mxu0 0
        %343 = vmatpush1.bf16.msra.mxu0 0
        %344 = vmatprep.subr.bf16.mxu0 0
        %345 = vmatpush1.bf16.msra.mxu0 0
        %346 = vmatprep.subr.bf16.mxu0 0
        %347 = vmatpush1.bf16.msra.mxu0 0
        %348 = vmatprep.subr.bf16.mxu0 0
        %349 = vmatpush1.bf16.msra.mxu0 0
        %350 = vmatprep.subr.bf16.mxu0 0
        %351 = vmatpush1.bf16.msra.mxu0 0
        %352 = vmatprep.subr.bf16.mxu0 0
        %353 = vmatpush1.bf16.msra.mxu0 0
        %354 = vmatprep.subr.bf16.mxu0 0
        %355 = vmatpush1.bf16.msra.mxu0 0
        %356 = vmatprep.subr.bf16.mxu0 0
        %357 = vmatpush1.bf16.msra.mxu0 0
        %358 = vmatprep.subr.bf16.mxu0 0
        %359 = vmatpush1.bf16.msra.mxu0 0
        %360 = vmatprep.subr.bf16.mxu0 0
        %361 = vmatpush1.bf16.msra.mxu0 0
        %362 = vmatprep.mubr.bf16.mxu0 0
        %363 = vmatmul.mubr.bf16.gmra.mrb[0].mxu0 %v307
        %v364 = vpop.f32.mrb[0].mxu0
        %v365 = vadd.f32 %v293, %v364
        %v366 = vpop.f32.mrb[0].mxu0
        %v367 = vadd.f32 %v297, %v366
        %v368 = vpop.f32.mrb[0].mxu0
        %v369 = vadd.f32 %v293, %v368
        %v370 = vpop.f32.mrb[0].mxu0
        %v371 = vadd.f32 %v297, %v370
        %372 = vmatprep.mubr.bf16.mxu0 0
        %373 = vmatmul.mubr.bf16.gmra.mrb[0].mxu0 %v310
        %v374 = vpop.f32.mrb[0].mxu0
        %v375 = vadd.f32 %v293, %v374
        %v376 = vpop.f32.mrb[0].mxu0
        %v377 = vadd.f32 %v297, %v376
        %v378 = vpop.f32.mrb[0].mxu0
        %v379 = vadd.f32 %v293, %v378
        %v380 = vpop.f32.mrb[0].mxu0
        %v381 = vadd.f32 %v297, %v380
        %382 = vmatprep.mubr.bf16.mxu0 0
        %383 = vmatmul.mubr.bf16.gmra.mrb[0].mxu0 %v313
        %v384 = vpop.f32.mrb[0].mxu0
        %v385 = vadd.f32 %v293, %v384
        %v386 = vpop.f32.mrb[0].mxu0
        %v387 = vadd.f32 %v297, %v386
        %v388 = vpop.f32.mrb[0].mxu0
        %v389 = vadd.f32 %v293, %v388
        %v390 = vpop.f32.mrb[0].mxu0
        %v391 = vadd.f32 %v297, %v390
        %392 = vmatprep.mubr.bf16.mxu0 0
        %393 = vmatmul.mubr.bf16.gmra.mrb[0].mxu0 %v316
        %v394 = vpop.f32.mrb[0].mxu0
        %v395 = vadd.f32 %v293, %v394
        %v396 = vpop.f32.mrb[0].mxu0
        %v397 = vadd.f32 %v297, %v396
        %v398 = vpop.f32.mrb[0].mxu0
        %v399 = vadd.f32 %v293, %v398
        %v400 = vpop.f32.mrb[0].mxu0
        %v401 = vadd.f32 %v297, %v400
        %402 = vmatprep.mubr.bf16.mxu0 0
        %403 = vmatmul.mubr.bf16.gmra.mrb[0].mxu0 %v319
        %v404 = vpop.f32.mrb[0].mxu0
        %v405 = vadd.f32 %v293, %v404
        %v406 = vpop.f32.mrb[0].mxu0
        %v407 = vadd.f32 %v297, %v406
        %v408 = vpop.f32.mrb[0].mxu0
        %v409 = vadd.f32 %v293, %v408
        %v410 = vpop.f32.mrb[0].mxu0
        %v411 = vadd.f32 %v297, %v410
        %412 = vmatprep.mubr.bf16.mxu0 0
        %413 = vmatmul.mubr.bf16.gmra.mrb[0].mxu0 %v322
        %v414 = vpop.f32.mrb[0].mxu0
        %v415 = vadd.f32 %v293, %v414
        %v416 = vpop.f32.mrb[0].mxu0
        %v417 = vadd.f32 %v297, %v416
        %v418 = vpop.f32.mrb[0].mxu0
        %v419 = vadd.f32 %v293, %v418
        %v420 = vpop.f32.mrb[0].mxu0
        %v421 = vadd.f32 %v297, %v420
        %422 = vmatprep.mubr.bf16.mxu0 0
        %423 = vmatmul.mubr.bf16.gmra.mrb[0].mxu0 %v325
        %v424 = vpop.f32.mrb[0].mxu0
        %v425 = vadd.f32 %v293, %v424
        %v426 = vpop.f32.mrb[0].mxu0
        %v427 = vadd.f32 %v297, %v426
        %v428 = vpop.f32.mrb[0].mxu0
        %v429 = vadd.f32 %v293, %v428
        %v430 = vpop.f32.mrb[0].mxu0
        %v431 = vadd.f32 %v297, %v430
        %432 = vmatprep.mubr.bf16.mxu0 0
        %433 = vmatmul.mubr.bf16.gmra.mrb[0].mxu0 %v328
        %v434 = vpop.f32.mrb[0].mxu0
        %v435 = vadd.f32 %v293, %v434
        %v436 = vpop.f32.mrb[0].mxu0
        %v437 = vadd.f32 %v297, %v436
        %v438 = vpop.f32.mrb[0].mxu0
        %v439 = vadd.f32 %v293, %v438
        %v440 = vpop.f32.mrb[0].mxu0
        %v441 = vadd.f32 %v297, %v440
        %442 = vdwg.mxu0
        %443 = vmatprep.subr.bf16.mxu0 0
        %444 = vmatpush1.bf16.msra.mxu0 %v284
        %445 = vmatprep.subr.bf16.mxu0 0
        %446 = vmatpush1.bf16.msra.mxu0 %v287
        %447 = vmatprep.subr.bf16.mxu0 0
        %448 = vmatpush1.bf16.msra.mxu0 0
        %449 = vmatprep.subr.bf16.mxu0 0
        %450 = vmatpush1.bf16.msra.mxu0 0
        %451 = vmatprep.subr.bf16.mxu0 0
        %452 = vmatpush1.bf16.msra.mxu0 0
        %453 = vmatprep.subr.bf16.mxu0 0
        %454 = vmatpush1.bf16.msra.mxu0 0
        %455 = vmatprep.subr.bf16.mxu0 0
        %456 = vmatpush1.bf16.msra.mxu0 0
        %457 = vmatprep.subr.bf16.mxu0 0
        %458 = vmatpush1.bf16.msra.mxu0 0
        %459 = vmatprep.subr.bf16.mxu0 0
        %460 = vmatpush1.bf16.msra.mxu0 0
        %461 = vmatprep.subr.bf16.mxu0 0
        %462 = vmatpush1.bf16.msra.mxu0 0
        %463 = vmatprep.subr.bf16.mxu0 0
        %464 = vmatpush1.bf16.msra.mxu0 0
        %465 = vmatprep.subr.bf16.mxu0 0
        %466 = vmatpush1.bf16.msra.mxu0 0
        %467 = vmatprep.subr.bf16.mxu0 0
        %468 = vmatpush1.bf16.msra.mxu0 0
        %469 = vmatprep.subr.bf16.mxu0 0
        %470 = vmatpush1.bf16.msra.mxu0 0
        %471 = vmatprep.subr.bf16.mxu0 0
        %472 = vmatpush1.bf16.msra.mxu0 0
        %473 = vmatprep.subr.bf16.mxu0 0
        %474 = vmatpush1.bf16.msra.mxu0 0
        %475 = vmatprep.mubr.bf16.mxu0 0
        %476 = vmatmul.mubr.bf16.gmra.mrb[0].mxu0 %v307
        %v477 = vpop.f32.mrb[0].mxu0
        %v478 = vadd.f32 %v301, %v477
        %v479 = vpop.f32.mrb[0].mxu0
        %v480 = vpop.f32.mrb[0].mxu0
        %v481 = vadd.f32 %v301, %v480
        %v482 = vpop.f32.mrb[0].mxu0
        %483 = vmatprep.mubr.bf16.mxu0 0
        %484 = vmatmul.mubr.bf16.gmra.mrb[0].mxu0 %v310
        %v485 = vpop.f32.mrb[0].mxu0
        %v486 = vadd.f32 %v301, %v485
        %v487 = vpop.f32.mrb[0].mxu0
        %v488 = vpop.f32.mrb[0].mxu0
        %v489 = vadd.f32 %v301, %v488
        %v490 = vpop.f32.mrb[0].mxu0
        %491 = vmatprep.mubr.bf16.mxu0 0
        %492 = vmatmul.mubr.bf16.gmra.mrb[0].mxu0 %v313
        %v493 = vpop.f32.mrb[0].mxu0
        %v494 = vadd.f32 %v301, %v493
        %v495 = vpop.f32.mrb[0].mxu0
        %v496 = vpop.f32.mrb[0].mxu0
        %v497 = vadd.f32 %v301, %v496
        %v498 = vpop.f32.mrb[0].mxu0
        %499 = vmatprep.mubr.bf16.mxu0 0
        %500 = vmatmul.mubr.bf16.gmra.mrb[0].mxu0 %v316
        %v501 = vpop.f32.mrb[0].mxu0
        %v502 = vadd.f32 %v301, %v501
        %v503 = vpop.f32.mrb[0].mxu0
        %v504 = vpop.f32.mrb[0].mxu0
        %v505 = vadd.f32 %v301, %v504
        %v506 = vpop.f32.mrb[0].mxu0
        %507 = vmatprep.mubr.bf16.mxu0 0
        %508 = vmatmul.mubr.bf16.gmra.mrb[0].mxu0 %v319
        %v509 = vpop.f32.mrb[0].mxu0
        %v510 = vadd.f32 %v301, %v509
        %v511 = vpop.f32.mrb[0].mxu0
        %v512 = vpop.f32.mrb[0].mxu0
        %v513 = vadd.f32 %v301, %v512
        %v514 = vpop.f32.mrb[0].mxu0
        %515 = vmatprep.mubr.bf16.mxu0 0
        %516 = vmatmul.mubr.bf16.gmra.mrb[0].mxu0 %v322
        %v517 = vpop.f32.mrb[0].mxu0
        %v518 = vadd.f32 %v301, %v517
        %v519 = vpop.f32.mrb[0].mxu0
        %v520 = vpop.f32.mrb[0].mxu0
        %v521 = vadd.f32 %v301, %v520
        %v522 = vpop.f32.mrb[0].mxu0
        %523 = vmatprep.mubr.bf16.mxu0 0
        %524 = vmatmul.mubr.bf16.gmra.mrb[0].mxu0 %v325
        %v525 = vpop.f32.mrb[0].mxu0
        %v526 = vadd.f32 %v301, %v525
        %v527 = vpop.f32.mrb[0].mxu0
        %v528 = vpop.f32.mrb[0].mxu0
        %v529 = vadd.f32 %v301, %v528
        %v530 = vpop.f32.mrb[0].mxu0
        %531 = vmatprep.mubr.bf16.mxu0 0
        %532 = vmatmul.mubr.bf16.gmra.mrb[0].mxu0 %v328
        %v533 = vpop.f32.mrb[0].mxu0
        %v534 = vadd.f32 %v301, %v533
        %v535 = vpop.f32.mrb[0].mxu0
        %v536 = vpop.f32.mrb[0].mxu0
        %v537 = vadd.f32 %v301, %v536
        %v538 = vpop.f32.mrb[0].mxu0
        %539 = vdwg.mxu0
        %v540 = vpack.c.bf16 %v369, %v365
        %v541 = vpack.c.bf16 %v379, %v375
        %v542 = vpack.c.bf16 %v389, %v385
        %v543 = vpack.c.bf16 %v399, %v395
        %v544 = vpack.c.bf16 %v409, %v405
        %v545 = vpack.c.bf16 %v419, %v415
        %v546 = vpack.c.bf16 %v429, %v425
        %v547 = vpack.c.bf16 %v439, %v435
        %v556 = vunpack.c.l.b16 %v540
        %v557 = vunpack.c.h.b16 %v540
        %v558 = vunpack.c.l.b16 %v541
        %v559 = vunpack.c.h.b16 %v541
        %v560 = vunpack.c.l.b16 %v542
        %v561 = vunpack.c.h.b16 %v542
        %v562 = vunpack.c.l.b16 %v543
        %v563 = vunpack.c.h.b16 %v543
        %v564 = vunpack.c.l.b16 %v544
        %v565 = vunpack.c.h.b16 %v544
        %v566 = vunpack.c.l.b16 %v545
        %v567 = vunpack.c.h.b16 %v545
        %v568 = vunpack.c.l.b16 %v546
        %v569 = vunpack.c.h.b16 %v546
        %v570 = vunpack.c.l.b16 %v547
        %v571 = vunpack.c.h.b16 %v547
        %v572 = vpack.c.b16 %v556, %v556
        %v573 = vpack.c.b16 %v557, %v557
        %v574 = vpack.c.b16 %v558, %v558
        %v575 = vpack.c.b16 %v559, %v559
        %v576 = vpack.c.b16 %v560, %v560
        %v577 = vpack.c.b16 %v561, %v561
        %v578 = vpack.c.b16 %v562, %v562
        %v579 = vpack.c.b16 %v563, %v563
        %v580 = vpack.c.b16 %v564, %v564
        %v581 = vpack.c.b16 %v565, %v565
        %v582 = vpack.c.b16 %v566, %v566
        %v583 = vpack.c.b16 %v567, %v567
        %v584 = vpack.c.b16 %v568, %v568
        %v585 = vpack.c.b16 %v569, %v569
        %v586 = vpack.c.b16 %v570, %v570
        %v587 = vpack.c.b16 %v571, %v571
        %604 = vst [vmem:[%s222] sm:$0xf] %v572
        %605 = vst [vmem:[%s222 + $0x4] sm:$0xf] %v573
        %606 = vst [vmem:[%s222 + $0x8] sm:$0xf] %v574
        %607 = vst [vmem:[%s222 + $0xc] sm:$0xf] %v575
        %608 = vst [vmem:[%s222 + $0x10] sm:$0xf] %v576
        %609 = vst [vmem:[%s222 + $0x14] sm:$0xf] %v577
        %610 = vst [vmem:[%s222 + $0x18] sm:$0xf] %v578
        %611 = vst [vmem:[%s222 + $0x1c] sm:$0xf] %v579
        %612 = vst [vmem:[%s222 + $0x20] sm:$0xf] %v580
        %613 = vst [vmem:[%s222 + $0x24] sm:$0xf] %v581
        %614 = vst [vmem:[%s222 + $0x28] sm:$0xf] %v582
        %615 = vst [vmem:[%s222 + $0x2c] sm:$0xf] %v583
        %616 = vst [vmem:[%s222 + $0x30] sm:$0xf] %v584
        %617 = vst [vmem:[%s222 + $0x34] sm:$0xf] %v585
        %618 = vst [vmem:[%s222 + $0x38] sm:$0xf] %v586
        %619 = vst [vmem:[%s222 + $0x3c] sm:$0xf] %v587
        %620 = vst [vmem:[%s229] sm:$0xff] %v367
        %621 = vst [vmem:[%s229 + $0x8] sm:$0xff] %v371
        %622 = vst [vmem:[%s229 + $0x10] sm:$0xff] %v377
        %623 = vst [vmem:[%s229 + $0x18] sm:$0xff] %v381
        %624 = vst [vmem:[%s229 + $0x20] sm:$0xff] %v387
        %625 = vst [vmem:[%s229 + $0x28] sm:$0xff] %v391
        %626 = vst [vmem:[%s229 + $0x30] sm:$0xff] %v397
        %627 = vst [vmem:[%s229 + $0x38] sm:$0xff] %v401
        %628 = vst [vmem:[%s229 + $0x40] sm:$0xff] %v407
        %629 = vst [vmem:[%s229 + $0x48] sm:$0xff] %v411
        %630 = vst [vmem:[%s229 + $0x50] sm:$0xff] %v417
        %631 = vst [vmem:[%s229 + $0x58] sm:$0xff] %v421
        %632 = vst [vmem:[%s229 + $0x60] sm:$0xff] %v427
        %633 = vst [vmem:[%s229 + $0x68] sm:$0xff] %v431
        %634 = vst [vmem:[%s229 + $0x70] sm:$0xff] %v437
        %635 = vst [vmem:[%s229 + $0x78] sm:$0xff] %v441
        %636 = vxpose.xlu0.b32.start [1/16] %v478, 128
        %637 = vxpose.xlu0.b32.cont [2/16] %v481, 128
        %638 = vxpose.xlu0.b32.cont [3/16] %v486, 128
        %639 = vxpose.xlu0.b32.cont [4/16] %v489, 128
        %640 = vxpose.xlu0.b32.cont [5/16] %v494, 128
        %641 = vxpose.xlu0.b32.cont [6/16] %v497, 128
        %642 = vxpose.xlu0.b32.cont [7/16] %v502, 128
        %643 = vxpose.xlu0.b32.cont [8/16] %v505, 128
        %644 = vxpose.xlu0.b32.cont [9/16] %v510, 128
        %645 = vxpose.xlu0.b32.cont [10/16] %v513, 128
        %646 = vxpose.xlu0.b32.cont [11/16] %v518, 128
        %647 = vxpose.xlu0.b32.cont [12/16] %v521, 128
        %648 = vxpose.xlu0.b32.cont [13/16] %v526, 128
        %649 = vxpose.xlu0.b32.cont [14/16] %v529, 128
        %650 = vxpose.xlu0.b32.cont [15/16] %v534, 128
        %651 = vxpose.xlu0.b32.end [16/16] %v537, 128
        %v652 = vpop.trf.xlu0
        %v653 = vpop.trf.xlu0
        %v654 = vpop.trf.xlu0
        %v655 = vpop.trf.xlu0
        %v656 = vpop.trf.xlu0
        %v657 = vpop.trf.xlu0
        %v658 = vpop.trf.xlu0
        %v659 = vpop.trf.xlu0
        %v660 = vpop.trf.xlu0
        %v661 = vpop.trf.xlu0
        %v662 = vpop.trf.xlu0
        %v663 = vpop.trf.xlu0
        %v664 = vpop.trf.xlu0
        %v665 = vpop.trf.xlu0
        %v666 = vpop.trf.xlu0
        %v667 = vpop.trf.xlu0
        %668 = vst [vmem:[%s236] sm:$0xff] %v652
        %s669 = sand.u32 %s99, 1
        %s670 = scalar_lea.sflag [#allocation3], %s669
        %s671 = sand.u32 %s99, 1
        %s672 = smul.addr %s671, 64
        %s673 = scalar_lea.vmem [#allocation2], %s672
        %s674 = sand.u32 %s23, 1
        %s675 = scalar_lea.sflag [#allocation5], %s674
        %s676 = sand.u32 %s125, 1
        %s677 = smul.addr %s676, 128
        %s678 = scalar_lea.vmem [#allocation4], %s677
        %s679 = sand.u32 %s23, 1
        %s680 = scalar_lea.sflag [#allocation5], %s679
        %s681 = sand.u32 %s151, 1
        %s682 = smul.addr %s681, 8
        %s683 = scalar_lea.vmem [#allocation6], %s682
        // Predicated region
        $region33: #{tpu_custom_call.1} parent=31 // pred_check
          %p684 = pneg %p109
        $region34: #{tpu_custom_call.1} parent=31 // pred_check_branch
          %686 = sbr.rel (%p684) target = $region36
        $region35: #{tpu_custom_call.1} parent=31 // pred_region
          %s687 = smul.u32 16, %s23
          %s689 = ssub.s32 1024, 1024
          %690 = vsyncadd %s670, %s689
          %s691 = smul.addr %s687, 64
          %s692 = scalar_lea.hbm %s3, %s691
          %s693 = sshll.u32 %s673, 4
          %s694 = int_to_ptr.vmem [resolvable:$true] %s693
          %699 = dma.vmem_to_hbm [thread:$0]  %s694, 1024, %s692, %s670, 64, 64, 4
        $region36: #{tpu_custom_call.1} parent=31 // pred_fallthru
          _
        // Predicated region
        $region37: #{tpu_custom_call.1} parent=31 // pred_check
          %p700 = pneg %p135
        $region38: #{tpu_custom_call.1} parent=31 // pred_check_branch
          %702 = sbr.rel (%p700) target = $region40
        $region39: #{tpu_custom_call.1} parent=31 // pred_region
          %s703 = smul.u32 16, %s23
          %s705 = ssub.s32 2048, 2048
          %706 = vsyncadd %s675, %s705
          %s707 = smul.addr %s703, 128
          %s708 = scalar_lea.hbm %s4, %s707
          %s709 = sshll.u32 %s678, 4
          %s710 = int_to_ptr.vmem [resolvable:$true] %s709
          %715 = dma.vmem_to_hbm [thread:$0]  %s710, 2048, %s708, %s675, 128, 128, 8
        $region40: #{tpu_custom_call.1} parent=31 // pred_fallthru
          _
        // Predicated region
        $region41: #{tpu_custom_call.1} parent=31 // pred_check
          %p716 = pneg %p161
        $region42: #{tpu_custom_call.1} parent=31 // pred_check_branch
          %718 = sbr.rel (%p716) target = $region44
        $region43: #{tpu_custom_call.1} parent=31 // pred_region
          %s720 = ssub.s32 128, 128
          %721 = vsyncadd %s680, %s720
          %s722 = smul.addr %s23, 128
          %s723 = scalar_lea.hbm %s5, %s722
          %s725 = sshll.u32 %s683, 4
          %s726 = int_to_ptr.vmem [resolvable:$true] %s725
          %728 = dma.vmem_to_hbm [thread:$0]  %s726, 128, %s723, %s680
        $region44: #{tpu_custom_call.1} parent=31 // pred_fallthru
          _
      $region32: #{tpu_custom_call.1} parent=5 // pred_fallthru
        _
      %p729 = scmp.le.s32.totalorder 2, %s18
      // Predicated region
      $region45: #{tpu_custom_call.1} parent=5 // pred_check
        %p730 = pneg %p729
      $region46: #{tpu_custom_call.1} parent=5 // pred_check_branch
        %732 = sbr.rel (%p730) target = $region48
      $region47: #{tpu_custom_call.1} parent=5 // pred_region
        %s733 = ssub.s32 %s18, 2
        // Predicated region
        $region49: #{tpu_custom_call.1} parent=47 // pred_check
          %p734 = pneg %p115
        $region50: #{tpu_custom_call.1} parent=47 // pred_check_branch
          %736 = sbr.rel (%p734) target = $region52
        $region51: #{tpu_custom_call.1} parent=47 // pred_region
          %s737 = sand.u32 %s100, 1
          %s738 = scalar_lea.sflag [#allocation3], %s737
          %s739 = sand.u32 %s100, 1
          %s740 = smul.addr %s739, 64
          %s741 = scalar_lea.vmem [#allocation2], %s740
          %742 = dma.done %s738, 1024
        $region52: #{tpu_custom_call.1} parent=47 // pred_fallthru
          _
        // Predicated region
        $region53: #{tpu_custom_call.1} parent=47 // pred_check
          %p743 = pneg %p141
        $region54: #{tpu_custom_call.1} parent=47 // pred_check_branch
          %745 = sbr.rel (%p743) target = $region56
        $region55: #{tpu_custom_call.1} parent=47 // pred_region
          %s746 = sand.u32 %s24, 1
          %s747 = scalar_lea.sflag [#allocation5], %s746
          %s748 = sand.u32 %s126, 1
          %s749 = smul.addr %s748, 128
          %s750 = scalar_lea.vmem [#allocation4], %s749
          %751 = dma.done %s747, 2048
        $region56: #{tpu_custom_call.1} parent=47 // pred_fallthru
          _
        // Predicated region
        $region57: #{tpu_custom_call.1} parent=47 // pred_check
          %p752 = pneg %p167
        $region58: #{tpu_custom_call.1} parent=47 // pred_check_branch
          %754 = sbr.rel (%p752) target = $region60
        $region59: #{tpu_custom_call.1} parent=47 // pred_region
          %s755 = sand.u32 %s24, 1
          %s756 = scalar_lea.sflag [#allocation5], %s755
          %s757 = sand.u32 %s152, 1
          %s758 = smul.addr %s757, 8
          %s759 = scalar_lea.vmem [#allocation6], %s758
          %760 = dma.done %s756, 128
        $region60: #{tpu_custom_call.1} parent=47 // pred_fallthru
          _
      $region48: #{tpu_custom_call.1} parent=5 // pred_fallthru
        _
    $region6: #{tpu_custom_call.1} parent=1 // loop_footer
      %s22 = sadd.s32 1, %s18
    $region7: #{tpu_custom_call.1} parent=1 // loop_footer_branch
      %17 = sbr.rel target = $region3
    $region8: #{tpu_custom_call.1} parent=1 // loop_exit
      _
    %761 = vsyncpa [#allocation3], 1
    %s762 = scalar_lea.sflag [#allocation3], 1
    %763 = vsyncpa %s762, 1
    %764 = vsyncpa [#allocation5], 1
    %s765 = scalar_lea.sflag [#allocation5], 1
    %766 = vsyncpa %s765, 1

</llo_original>
